<compile_context>
chip_gen: v7x
topology: tpu7x:2x2x1
jax: 0.10.0
libtpu: 0.0.40
codegen_flags: <defaults>
</compile_context>

<pallas_src>
import jax
import jax.numpy as jnp
from jax.experimental import pallas as pl
from jax.experimental.pallas import tpu as pltpu


def _fused_kernel(params_ref, conv_ref, lin_ref,
                  conv_out_ref, lin_out_ref, emb_out_ref):
    """Fused pointwise affine (conv1d k=1, linear 1->1) + embedding broadcast.

    params_ref:   SMEM f32[5] = [conv_w, conv_b, lin_w, lin_b, emb_w]
    conv_ref:     VMEM f32[N, 1, L]
    lin_ref:      VMEM f32[B, S, 1]
    conv_out_ref: VMEM f32[N, 1, L]
    lin_out_ref:  VMEM f32[B, S, 1]
    emb_out_ref:  VMEM f32[*emb_shape, 1]
    """
    conv_w = params_ref[0]
    conv_b = params_ref[1]
    lin_w = params_ref[2]
    lin_b = params_ref[3]
    emb_w = params_ref[4]

    # Conv1d(1,1,1): per-element scale + shift.
    conv_out_ref[...] = conv_ref[...] * conv_w + conv_b
    # Linear(1,1): per-element scale + shift.
    lin_out_ref[...] = lin_ref[...] * lin_w + lin_b
    # Embedding(1,1): gather from a 1-row table == broadcast of the single
    # weight (indices are required to be 0, exactly as PyTorch requires).
    emb_out_ref[...] = jnp.broadcast_to(emb_w, emb_out_ref.shape)


def model_for_io_naming(conv_input, linear_input, embedding_input, params):
    """Mirrors ModelForIONamingTest.forward.

    conv_input:      f32[N, 1, L]   (PyTorch NCL)
    linear_input:    f32[B, S, 1]
    embedding_input: int[...]       CONTRACT: values must be 0 (num_embeddings=1);
                                    only its static shape is used.
    returns [conv_out, {'linear': ..., 'embedding': ...}]
    """
    N, C, L = conv_input.shape
    assert C == 1, "Conv1d in the reference module has in_channels == 1"
    B, S, F = linear_input.shape
    assert F == 1, "Linear in the reference module has in_features == 1"
    emb_shape = embedding_input.shape

    # One small HLO: pack the five scalar parameters into a single SMEM
    # operand (each reshape(-1) is a bitcast; one concatenate total).
    scalars = jnp.concatenate([
        params["conv_w"].reshape(-1),   # Conv1d weight (1,1,1)
        params["conv_b"].reshape(-1),   # Conv1d bias   (1,)
        params["lin_w"].reshape(-1),    # Linear weight (1,1)
        params["lin_b"].reshape(-1),    # Linear bias   (1,)
        params["emb_w"].reshape(-1),    # Embedding table (1,1)
    ]).astype(jnp.float32)

    conv_out, lin_out, emb_out = pl.pallas_call(
        _fused_kernel,
        out_shape=(
            jax.ShapeDtypeStruct((N, 1, L), jnp.float32),
            jax.ShapeDtypeStruct((B, S, 1), jnp.float32),
            jax.ShapeDtypeStruct((*emb_shape, 1), jnp.float32),
        ),
        in_specs=[
            pl.BlockSpec(memory_space=pltpu.MemorySpace.SMEM),   # packed scalars
            pl.BlockSpec(memory_space=pltpu.MemorySpace.VMEM),   # conv input
            pl.BlockSpec(memory_space=pltpu.MemorySpace.VMEM),   # linear input
        ],
        out_specs=(
            pl.BlockSpec(memory_space=pltpu.MemorySpace.VMEM),
            pl.BlockSpec(memory_space=pltpu.MemorySpace.VMEM),
            pl.BlockSpec(memory_space=pltpu.MemorySpace.VMEM),
        ),
    )(scalars,
      conv_input.astype(jnp.float32),
      linear_input.astype(jnp.float32))

    return [conv_out, {"linear": lin_out, "embedding": emb_out}]


if __name__ == "__main__":
    key = jax.random.PRNGKey(0)
    k1, k2, k3, k4, k5, k6, k7 = jax.random.split(key, 7)

    # Small shapes consistent with the module.
    N, L = 2, 16        # conv: (N, 1, L)
    B, S = 2, 8         # linear: (B, S, 1); embedding indices: (B, S)

    conv_input = jax.random.normal(k1, (N, 1, L), dtype=jnp.float32)
    linear_input = jax.random.normal(k2, (B, S, 1), dtype=jnp.float32)
    # num_embeddings == 1, so the only valid index is 0 (see CONTRACT above).
    embedding_input = jnp.zeros((B, S), dtype=jnp.int32)

    # Deterministic parameter init (shapes match the PyTorch module).
    params = {
        "conv_w": jax.random.normal(k3, (1, 1, 1), dtype=jnp.float32),
        "conv_b": jax.random.normal(k4, (1,), dtype=jnp.float32),
        "lin_w": jax.random.normal(k5, (1, 1), dtype=jnp.float32),
        "lin_b": jax.random.normal(k6, (1,), dtype=jnp.float32),
        "emb_w": jax.random.normal(k7, (1, 1), dtype=jnp.float32),
    }

    out = model_for_io_naming(conv_input, linear_input, embedding_input, params)
    jax.block_until_ready(out)

    # Pure-JAX reference check.
    ref_conv = conv_input * params["conv_w"][0, 0, 0] + params["conv_b"][0]
    ref_lin = linear_input * params["lin_w"][0, 0] + params["lin_b"][0]
    ref_emb = params["emb_w"][embedding_input]            # (B, S, 1)

    assert jnp.allclose(out[0], ref_conv, atol=1e-6)
    assert jnp.allclose(out[1]["linear"], ref_lin, atol=1e-6)
    assert jnp.allclose(out[1]["embedding"], ref_emb, atol=1e-6)

    print("KERNEL_OK")
</pallas_src>

<mosaic_0001>
module attributes {stable_mosaic.version = 11 : i64} {
  func.func @_fused_kernel(%arg0: memref<5xf32, #tpu.memory_space<smem>>, %arg1: memref<2x1x16xf32, #tpu.memory_space<vmem>>, %arg2: memref<2x8x1xf32, #tpu.memory_space<vmem>>, %arg3: memref<2x1x16xf32, #tpu.memory_space<vmem>>, %arg4: memref<2x8x1xf32, #tpu.memory_space<vmem>>, %arg5: memref<2x8x1xf32, #tpu.memory_space<vmem>>) attributes {dimension_semantics = [], scalar_prefetch = 0 : i64, scratch_operands = 0 : i64, tpu.core_type = #tpu.core_type<tc>} {
    %c0 = arith.constant 0 : index
    %0 = memref.load %arg0[%c0] : memref<5xf32, #tpu.memory_space<smem>>
    %c1 = arith.constant 1 : index
    %1 = memref.load %arg0[%c1] : memref<5xf32, #tpu.memory_space<smem>>
    %c2 = arith.constant 2 : index
    %2 = memref.load %arg0[%c2] : memref<5xf32, #tpu.memory_space<smem>>
    %c3 = arith.constant 3 : index
    %3 = memref.load %arg0[%c3] : memref<5xf32, #tpu.memory_space<smem>>
    %c4 = arith.constant 4 : index
    %4 = memref.load %arg0[%c4] : memref<5xf32, #tpu.memory_space<smem>>
    %c0_0 = arith.constant 0 : index
    %c0_1 = arith.constant 0 : index
    %c0_2 = arith.constant 0 : index
    %5 = vector.load %arg1[%c0_0, %c0_1, %c0_2] : memref<2x1x16xf32, #tpu.memory_space<vmem>>, vector<2x1x16xf32>
    %6 = vector.broadcast %0 : f32 to vector<2x1x16xf32>
    %7 = arith.mulf %5, %6 : vector<2x1x16xf32>
    %8 = vector.broadcast %1 : f32 to vector<2x1x16xf32>
    %9 = arith.addf %7, %8 : vector<2x1x16xf32>
    %c0_3 = arith.constant 0 : index
    %c0_4 = arith.constant 0 : index
    %c0_5 = arith.constant 0 : index
    %10 = vector.load %arg3[%c0_3, %c0_4, %c0_5] : memref<2x1x16xf32, #tpu.memory_space<vmem>>, vector<2x1x16xf32>
    tpu.vector_store %arg3[%c0_3, %c0_4, %c0_5], %9 {strides = array<i32>} : memref<2x1x16xf32, #tpu.memory_space<vmem>>, vector<2x1x16xf32>,
    %c0_6 = arith.constant 0 : index
    %c0_7 = arith.constant 0 : index
    %c0_8 = arith.constant 0 : index
    %11 = vector.load %arg2[%c0_6, %c0_7, %c0_8] : memref<2x8x1xf32, #tpu.memory_space<vmem>>, vector<2x8x1xf32>
    %12 = vector.broadcast %2 : f32 to vector<2x8x1xf32>
    %13 = arith.mulf %11, %12 : vector<2x8x1xf32>
    %14 = vector.broadcast %3 : f32 to vector<2x8x1xf32>
    %15 = arith.addf %13, %14 : vector<2x8x1xf32>
    %c0_9 = arith.constant 0 : index
    %c0_10 = arith.constant 0 : index
    %c0_11 = arith.constant 0 : index
    %16 = vector.load %arg4[%c0_9, %c0_10, %c0_11] : memref<2x8x1xf32, #tpu.memory_space<vmem>>, vector<2x8x1xf32>
    tpu.vector_store %arg4[%c0_9, %c0_10, %c0_11], %15 {strides = array<i32>} : memref<2x8x1xf32, #tpu.memory_space<vmem>>, vector<2x8x1xf32>,
    %17 = vector.broadcast %4 : f32 to vector<2x8x1xf32>
    %c0_12 = arith.constant 0 : index
    %c0_13 = arith.constant 0 : index
    %c0_14 = arith.constant 0 : index
    %18 = vector.load %arg5[%c0_12, %c0_13, %c0_14] : memref<2x8x1xf32, #tpu.memory_space<vmem>>, vector<2x8x1xf32>
    tpu.vector_store %arg5[%c0_12, %c0_13, %c0_14], %17 {strides = array<i32>} : memref<2x8x1xf32, #tpu.memory_space<vmem>>, vector<2x8x1xf32>,
    return
  }
}

</mosaic_0001>

<llo_original>
// kernel: tpu_custom_call.1
$region0: #{tpu_custom_call.1}
  #allocation0 [shape = 'u32[]', space=smem, size = 0x4, offset = 0x4, fixed_abs, tag = 'smem constant byte address 0x4 - core index']
  #allocation1 [shape = 'u32[144,128]{1,0:T(1,128)}', space=vmem, size = 0x12000, scoped, tag = 'internal scratch']
  %s0 = inlined_call_operand.vmem [shape: f32[5], index: 0, kind: input, shape index: {}]
  %s1 = inlined_call_operand.vmem [shape: f32[2,1,16], index: 1, kind: input, shape index: {}]
  %s2 = inlined_call_operand.vmem [shape: f32[2,8,1], index: 2, kind: input, shape index: {}]
  %s3 = inlined_call_operand.hbm [shape: f32[2,1,16], index: 3, kind: output, shape index: {0}]
  %s4 = inlined_call_operand.vmem [shape: f32[2,8,1], index: 4, kind: output, shape index: {1}]
  %s5 = inlined_call_operand.vmem [shape: f32[2,8,1], index: 5, kind: output, shape index: {2}]
  %6 = xla_tuple %s3, %s4, %s5
  %s7 = sld [smem:[#allocation0]]
  $region42: #{tpu_custom_call.1} parent=0
    _
  %s9 = ssub.s32 1, %s7
  %s10 = scalar_select 0, %s9, %s7
  $region1: #{tpu_custom_call.1} parent=0
    #allocation2 [shape = 'u8[512]{0}', space=smem, size = 0x200, scoped, tag = 'input window, operand 0, single buffered']
    #allocation3 [shape = 's32[1]{0}', space=sflag, size = 0x4, scoped, tag = 'scoped memory for tpu_custom_call.1']
    #allocation4 [shape = 's32[1]{0}', space=sflag, size = 0x4, scoped, tag = 'scoped memory for tpu_custom_call.1']
    #allocation5 [shape = 'u8[1024]{0}', space=vmem, size = 0x400, scoped, tag = 'output window, operand 0, single buffered']
    %11 = vsyncpa [#allocation4], 0
    %12 = vsyncpa [#allocation3], 0
    // Predicated region
    $region2: #{tpu_custom_call.1} parent=1 // pred_check
      _
    $region3: #{tpu_custom_call.1} parent=1 // pred_check_branch
      %14 = sbr.rel (0) target = $region5
    $region4: #{tpu_custom_call.1} parent=1 // pred_region
      %s16 = ssub.s32 16, 16
      %17 = vsyncadd [#allocation4], %s16
      %s19 = sshll.u32 %s0, 4
      %s20 = int_to_ptr.vmem [resolvable:$true] %s19
      %22 = dma.vmem_to_smem %s20, 16, [#allocation2], [#allocation4]
    $region5: #{tpu_custom_call.1} parent=1 // pred_fallthru
      _
    // Predicated region
    $region6: #{tpu_custom_call.1} parent=1 // pred_check
      _
    $region7: #{tpu_custom_call.1} parent=1 // pred_check_branch
      %24 = sbr.rel (0) target = $region9
    $region8: #{tpu_custom_call.1} parent=1 // pred_region
      _
    $region9: #{tpu_custom_call.1} parent=1 // pred_fallthru
      _
    // Predicated region
    $region10: #{tpu_custom_call.1} parent=1 // pred_check
      _
    $region11: #{tpu_custom_call.1} parent=1 // pred_check_branch
      %26 = sbr.rel (0) target = $region13
    $region12: #{tpu_custom_call.1} parent=1 // pred_region
      _
    $region13: #{tpu_custom_call.1} parent=1 // pred_fallthru
      _
    // Predicated region
    $region14: #{tpu_custom_call.1} parent=1 // pred_check
      _
    $region15: #{tpu_custom_call.1} parent=1 // pred_check_branch
      %28 = sbr.rel (0) target = $region17
    $region16: #{tpu_custom_call.1} parent=1 // pred_region
      %29 = dma.done [#allocation4], 16
    $region17: #{tpu_custom_call.1} parent=1 // pred_fallthru
      _
    %30 = sfence
    %s31 = sld [smem:[#allocation2]]
    %s32 = sld [smem:[#allocation2 + $0x1]]
    %s33 = sld [smem:[#allocation2 + $0x2]]
    %s34 = sld [smem:[#allocation2 + $0x3]]
    %s35 = sld [smem:[#allocation2 + $0x4]]
    %v36 = vld [vmem:[%s1] sm:$0x1]
    %v37 = vld [vmem:[%s1 + $0x1] sm:$0x1]
    %v38 = vstv %s31
    %v39 = vmul.f32 %v36, %v38
    %v40 = vmul.f32 %v37, %v38
    %v41 = vstv %s32
    %v42 = vadd.f32 %v39, %v41
    %v43 = vadd.f32 %v40, %v41
    %vm44 = vcmask 122880
    %45 = vst.msk [vmem:[#allocation5] sm:$0x1] %vm44, %v42
    %46 = vst.msk [vmem:[#allocation5 + $0x1] sm:$0x1] %vm44, %v43
    %v47 = vld [vmem:[%s2] sm:$0xff]
    %v48 = vld [vmem:[%s2 + $0x8] sm:$0xff]
    %v49 = vstv %s33
    %v50 = vmul.f32 %v47, %v49
    %v51 = vmul.f32 %v48, %v49
    %v52 = vstv %s34
    %v53 = vadd.f32 %v50, %v52
    %v54 = vadd.f32 %v51, %v52
    %vm55 = vcmask 7168
    %56 = vst.msk [vmem:[%s4] sm:$0xff] %vm55, %v53
    %57 = vst.msk [vmem:[%s4 + $0x8] sm:$0xff] %vm55, %v54
    %v58 = vstv %s35
    %59 = vst.msk [vmem:[%s5] sm:$0xff] %vm55, %v58
    %60 = vst.msk [vmem:[%s5 + $0x8] sm:$0xff] %vm55, %v58
    // Predicated region
    $region18: #{tpu_custom_call.1} parent=1 // pred_check
      _
    $region19: #{tpu_custom_call.1} parent=1 // pred_check_branch
      %62 = sbr.rel (0) target = $region21
    $region20: #{tpu_custom_call.1} parent=1 // pred_region
      %s64 = ssub.s32 32, 32
      %65 = vsyncadd [#allocation3], %s64
      %s66 = sshll.u32 [#allocation5], 4
      %s67 = int_to_ptr.vmem [resolvable:$true] %s66
      %72 = dma.vmem_to_hbm [thread:$0]  %s67, 32, %s3, [#allocation3], 16, 16, 1
    $region21: #{tpu_custom_call.1} parent=1 // pred_fallthru
      _
    // Predicated region
    $region22: #{tpu_custom_call.1} parent=1 // pred_check
      _
    $region23: #{tpu_custom_call.1} parent=1 // pred_check_branch
      %74 = sbr.rel (0) target = $region25
    $region24: #{tpu_custom_call.1} parent=1 // pred_region
      _
    $region25: #{tpu_custom_call.1} parent=1 // pred_fallthru
      _
    // Predicated region
    $region26: #{tpu_custom_call.1} parent=1 // pred_check
      _
    $region27: #{tpu_custom_call.1} parent=1 // pred_check_branch
      %76 = sbr.rel (0) target = $region29
    $region28: #{tpu_custom_call.1} parent=1 // pred_region
      _
    $region29: #{tpu_custom_call.1} parent=1 // pred_fallthru
      _
    // Predicated region
    $region30: #{tpu_custom_call.1} parent=1 // pred_check
      _
    $region31: #{tpu_custom_call.1} parent=1 // pred_check_branch
      %78 = sbr.rel (0) target = $region33
    $region32: #{tpu_custom_call.1} parent=1 // pred_region
      %79 = dma.done [#allocation3], 32
    $region33: #{tpu_custom_call.1} parent=1 // pred_fallthru
      _
    // Predicated region
    $region34: #{tpu_custom_call.1} parent=1 // pred_check
      _
    $region35: #{tpu_custom_call.1} parent=1 // pred_check_branch
      %81 = sbr.rel (0) target = $region37
    $region36: #{tpu_custom_call.1} parent=1 // pred_region
      _
    $region37: #{tpu_custom_call.1} parent=1 // pred_fallthru
      _
    // Predicated region
    $region38: #{tpu_custom_call.1} parent=1 // pred_check
      _
    $region39: #{tpu_custom_call.1} parent=1 // pred_check_branch
      %83 = sbr.rel (0) target = $region41
    $region40: #{tpu_custom_call.1} parent=1 // pred_region
      _
    $region41: #{tpu_custom_call.1} parent=1 // pred_fallthru
      _
    %84 = vsyncpa [#allocation3], 1
    %85 = vsyncpa [#allocation4], 1

</llo_original>
